<compile_context>
chip_gen: v7x
topology: tpu7x:2x2x1
jax: 0.10.0
libtpu: 0.0.40
codegen_flags: <defaults>
</compile_context>

<pallas_src>
import jax
import jax.numpy as jnp
from jax.experimental import pallas as pl
from jax.experimental.pallas import tpu as pltpu


def _ce_kernel(x_ref, w1_ref, b1_ref, w2_ref, b2_ref, o_ref):
    # x_ref:  (C, TN)    spatial slab of one batch element (channels-first)
    # w1_ref: (Cr, C)    bf16, BN1 scale folded in
    # b1_ref: (Cr, 1)    f32 shift (conv1 bias + BN1 shift)
    # w2_ref: (Cr, Cr)   bf16, BN2 scale folded in
    # b2_ref: (Cr, 1)    f32 shift (conv2 bias + BN2 shift)
    # o_ref:  (Cr, TN)   output slab, already NCHW-ordered
    x = x_ref[...].astype(jnp.bfloat16)                                 # (C, TN)
    h = jnp.dot(w1_ref[...], x, preferred_element_type=jnp.float32)    # (Cr, TN)
    h = jnp.maximum(h + b1_ref[...], 0.0)
    h = jnp.dot(w2_ref[...], h.astype(jnp.bfloat16),
                preferred_element_type=jnp.float32)                    # (Cr, TN)
    h = jnp.maximum(h + b2_ref[...], 0.0)
    o_ref[...] = h.astype(o_ref.dtype)


def channel_excitation(x_nchw, kernel_params, *, tn=1024, out_dtype=jnp.float32):
    """x_nchw: (B, C, H, W). Returns (B, C*r, H, W) in out_dtype (default f32)."""
    B, C, H, W = x_nchw.shape
    w1, b1, w2, b2 = kernel_params
    Cr = w1.shape[0]
    HW = H * W

    # Glue is reshape-only (contiguous view in NCHW): no transpose.
    x3d = x_nchw.reshape(B, C, HW)

    # Lane-align the spatial axis: pick tn as a multiple of 128 and zero-pad
    # HW up to a multiple of tn (one-time HBM pad only when misaligned).
    # Padded columns produce relu(shift) junk that is sliced away below.
    hw_128 = pl.cdiv(HW, 128) * 128
    tn = max(128, min(tn, hw_128))
    tn = (tn // 128) * 128
    n_tiles = pl.cdiv(hw_128, tn)
    hw_pad = n_tiles * tn
    if hw_pad != HW:
        x3d = jnp.pad(x3d, ((0, 0), (0, 0), (0, hw_pad - HW)))

    cost = pl.CostEstimate(
        flops=2 * B * hw_pad * (Cr * C + Cr * Cr),
        transcendentals=0,
        bytes_accessed=(x3d.dtype.itemsize * B * hw_pad * C
                        + jnp.dtype(out_dtype).itemsize * B * hw_pad * Cr
                        + 2 * Cr * (C + Cr) + 8 * Cr),
    )

    # Grid-invariant operands are single-buffered; x / out keep the default
    # double buffer (bump x to pl.Buffered(3) only if xprof shows exposed DMA).
    # TODO(synk): for very large Cr (>= ~2048 on v7x, 64 MiB VMEM) add a K-split
    # reduction grid axis over the W2 contraction (f32 accumulator + pl.when
    # init/finalize, axis "arbitrary"), or stream weights from HBM / use fp8.
    def _invariant_spec(shape):
        return pl.BlockSpec(shape, lambda b, i: (0, 0),
                            pipeline_mode=pl.Buffered(1))

    out3d = pl.pallas_call(
        _ce_kernel,
        out_shape=jax.ShapeDtypeStruct((B, Cr, hw_pad), out_dtype),
        grid_spec=pltpu.PrefetchScalarGridSpec(
            num_scalar_prefetch=0,
            grid=(B, n_tiles),
            in_specs=[
                pl.BlockSpec((pl.Squeezed(), C, tn), lambda b, i: (b, 0, i)),
                _invariant_spec((Cr, C)),    # W1' (BN1 scale folded)
                _invariant_spec((Cr, 1)),    # shift1
                _invariant_spec((Cr, Cr)),   # W2' (BN2 scale folded)
                _invariant_spec((Cr, 1)),    # shift2
            ],
            out_specs=pl.BlockSpec((pl.Squeezed(), Cr, tn),
                                   lambda b, i: (b, 0, i)),
        ),
        compiler_params=pltpu.CompilerParams(
            dimension_semantics=("parallel", "parallel"),
            vmem_limit_bytes=64 * 1024 * 1024,
        ),
        cost_estimate=cost,
    )(x3d, w1, b1, w2, b2)

    if hw_pad != HW:
        out3d = out3d[:, :, :HW]
    return out3d.reshape(B, Cr, H, W)


def make_raw_params(key, in_channels, r=4):
    """Deterministic synthetic parameters matching the PyTorch module shapes."""
    C = in_channels
    Cr = in_channels * r
    ks = jax.random.split(key, 10)
    return dict(
        w1=jax.random.normal(ks[0], (Cr, C), jnp.float32) * 0.1,
        bias1=jax.random.normal(ks[1], (Cr,), jnp.float32) * 0.1,
        g1=1.0 + 0.1 * jax.random.normal(ks[2], (Cr,), jnp.float32),
        be1=0.1 * jax.random.normal(ks[3], (Cr,), jnp.float32),
        mu1=0.1 * jax.random.normal(ks[4], (Cr,), jnp.float32),
        var1=jnp.abs(jax.random.normal(ks[5], (Cr,), jnp.float32)) * 0.5 + 0.5,
        w2=jax.random.normal(ks[6], (Cr, Cr), jnp.float32) * 0.1,
        bias2=jax.random.normal(ks[7], (Cr,), jnp.float32) * 0.1,
        g2=1.0 + 0.1 * jax.random.normal(ks[8], (Cr,), jnp.float32),
        be2=0.1 * jax.random.normal(ks[9], (Cr,), jnp.float32),
        mu2=jnp.zeros((Cr,), jnp.float32),
        var2=jnp.ones((Cr,), jnp.float32),
    )


def fold_params(p, eps=1e-5, weight_dtype=jnp.bfloat16):
    """Fold BN(eval) scale into the conv weights, bias+BN shift into one vector.

    weight_dtype=jnp.float8_e4m3fn is an option on v7x when weight VMEM binds.
    """
    s1 = p["g1"] / jnp.sqrt(p["var1"] + eps)
    s2 = p["g2"] / jnp.sqrt(p["var2"] + eps)
    w1f = (p["w1"] * s1[:, None]).astype(weight_dtype)               # (Cr, C)
    w2f = (p["w2"] * s2[:, None]).astype(weight_dtype)               # (Cr, Cr)
    b1f = ((p["bias1"] - p["mu1"]) * s1 + p["be1"])[:, None]         # (Cr, 1) f32
    b2f = ((p["bias2"] - p["mu2"]) * s2 + p["be2"])[:, None]         # (Cr, 1) f32
    return (w1f, b1f, w2f, b2f)


def _reference(x_nchw, p, eps=1e-5):
    """Pure-JAX f32 reference: conv1x1 -> BN(eval) -> relu, twice."""
    B, C, H, W = x_nchw.shape
    Cr = p["w1"].shape[0]
    x = x_nchw.reshape(B, C, H * W)
    h = jnp.einsum("oc,bcn->bon", p["w1"], x) + p["bias1"][:, None]
    h = (h - p["mu1"][:, None]) / jnp.sqrt(p["var1"] + eps)[:, None]
    h = h * p["g1"][:, None] + p["be1"][:, None]
    h = jnp.maximum(h, 0.0)
    h = jnp.einsum("oc,bcn->bon", p["w2"], h) + p["bias2"][:, None]
    h = (h - p["mu2"][:, None]) / jnp.sqrt(p["var2"] + eps)[:, None]
    h = h * p["g2"][:, None] + p["be2"][:, None]
    h = jnp.maximum(h, 0.0)
    return h.reshape(B, Cr, H, W)


if __name__ == "__main__":
    key = jax.random.PRNGKey(0)
    kx, kx2, kp = jax.random.split(key, 3)

    B, C, r = 2, 4, 4
    raw = make_raw_params(kp, C, r=r)
    kparams = fold_params(raw)

    # Case 1: lane-aligned spatial size (16x16 -> HW=256, no padding path).
    x = jax.random.normal(kx, (B, C, 16, 16), jnp.float32)
    out = jax.block_until_ready(channel_excitation(x, kparams))
    ref = _reference(x, raw)
    assert out.shape == (B, C * r, 16, 16), out.shape
    # bf16 weights/activations in the matmuls -> loosened tolerance vs f32 ref.
    assert jnp.allclose(out, ref, atol=1e-2, rtol=1e-2), "mismatch (16x16)"

    # Case 2: non-128-multiple spatial size (14x14 -> HW=196, padding path).
    x2 = jax.random.normal(kx2, (B, C, 14, 14), jnp.float32)
    out2 = jax.block_until_ready(channel_excitation(x2, kparams))
    ref2 = _reference(x2, raw)
    assert out2.shape == (B, C * r, 14, 14), out2.shape
    assert jnp.allclose(out2, ref2, atol=1e-2, rtol=1e-2), "mismatch (14x14)"

    print("KERNEL_OK")
</pallas_src>

<mosaic_0001>
module attributes {stable_mosaic.version = 11 : i64} {
  func.func @_ce_kernel(%arg0: i32, %arg1: i32, %arg2: memref<1x4x256xf32, #tpu.memory_space<vmem>>, %arg3: memref<16x4xbf16, #tpu.memory_space<vmem>>, %arg4: memref<16x1xf32, #tpu.memory_space<vmem>>, %arg5: memref<16x16xbf16, #tpu.memory_space<vmem>>, %arg6: memref<16x1xf32, #tpu.memory_space<vmem>>, %arg7: memref<1x16x256xf32, #tpu.memory_space<vmem>>) attributes {dimension_semantics = [#tpu.dimension_semantics<parallel>, #tpu.dimension_semantics<parallel>], iteration_bounds = array<i64: 2, 1>, scalar_prefetch = 0 : i64, scratch_operands = 0 : i64, tpu.core_type = #tpu.core_type<tc>, window_params = [{transform_indices = @transform_0, window_bounds = array<i64: 1, 4, 256>}, {pipeline_mode = #tpu.pipeline_mode<synchronous>, transform_indices = @transform_1, window_bounds = array<i64: 16, 4>}, {pipeline_mode = #tpu.pipeline_mode<synchronous>, transform_indices = @transform_2, window_bounds = array<i64: 16, 1>}, {pipeline_mode = #tpu.pipeline_mode<synchronous>, transform_indices = @transform_3, window_bounds = array<i64: 16, 16>}, {pipeline_mode = #tpu.pipeline_mode<synchronous>, transform_indices = @transform_4, window_bounds = array<i64: 16, 1>}, {transform_indices = @transform_5, window_bounds = array<i64: 1, 16, 256>}]} {
    %c0 = arith.constant 0 : index
    %c0_0 = arith.constant 0 : index
    %c0_1 = arith.constant 0 : index
    %0 = vector.load %arg2[%c0, %c0_0, %c0_1] : memref<1x4x256xf32, #tpu.memory_space<vmem>>, vector<1x4x256xf32>
    %1 = vector.shape_cast %0 : vector<1x4x256xf32> to vector<4x256xf32>
    %2 = arith.truncf %1 : vector<4x256xf32> to vector<4x256xbf16>
    %c0_2 = arith.constant 0 : index
    %c0_3 = arith.constant 0 : index
    %3 = vector.load %arg3[%c0_2, %c0_3] : memref<16x4xbf16, #tpu.memory_space<vmem>>, vector<16x4xbf16>
    %cst = arith.constant dense<0.000000e+00> : vector<16x256xf32>
    %4 = tpu.matmul %3, %2, %cst {dimension_numbers = #tpu.dot_dimension_numbers<[1], [0], [0], [1], [0, 0, 1, 1], [], []>} : vector<16x4xbf16>, vector<4x256xbf16>, vector<16x256xf32> -> vector<16x256xf32>
    %c0_4 = arith.constant 0 : index
    %c0_5 = arith.constant 0 : index
    %5 = vector.load %arg4[%c0_4, %c0_5] : memref<16x1xf32, #tpu.memory_space<vmem>>, vector<16x1xf32>
    %6 = vector.broadcast %5 : vector<16x1xf32> to vector<16x256xf32>
    %7 = arith.addf %4, %6 : vector<16x256xf32>
    %cst_6 = arith.constant 0.000000e+00 : f32
    %8 = vector.broadcast %cst_6 : f32 to vector<16x256xf32>
    %9 = arith.maximumf %7, %8 : vector<16x256xf32>
    %c0_7 = arith.constant 0 : index
    %c0_8 = arith.constant 0 : index
    %10 = vector.load %arg5[%c0_7, %c0_8] : memref<16x16xbf16, #tpu.memory_space<vmem>>, vector<16x16xbf16>
    %11 = arith.truncf %9 : vector<16x256xf32> to vector<16x256xbf16>
    %cst_9 = arith.constant dense<0.000000e+00> : vector<16x256xf32>
    %12 = tpu.matmul %10, %11, %cst_9 {dimension_numbers = #tpu.dot_dimension_numbers<[1], [0], [0], [1], [0, 0, 1, 1], [], []>} : vector<16x16xbf16>, vector<16x256xbf16>, vector<16x256xf32> -> vector<16x256xf32>
    %c0_10 = arith.constant 0 : index
    %c0_11 = arith.constant 0 : index
    %13 = vector.load %arg6[%c0_10, %c0_11] : memref<16x1xf32, #tpu.memory_space<vmem>>, vector<16x1xf32>
    %14 = vector.broadcast %13 : vector<16x1xf32> to vector<16x256xf32>
    %15 = arith.addf %12, %14 : vector<16x256xf32>
    %cst_12 = arith.constant 0.000000e+00 : f32
    %16 = vector.broadcast %cst_12 : f32 to vector<16x256xf32>
    %17 = arith.maximumf %15, %16 : vector<16x256xf32>
    %c0_13 = arith.constant 0 : index
    %c0_14 = arith.constant 0 : index
    %c0_15 = arith.constant 0 : index
    %18 = vector.load %arg7[%c0_13, %c0_14, %c0_15] : memref<1x16x256xf32, #tpu.memory_space<vmem>>, vector<1x16x256xf32>
    %19 = vector.shape_cast %18 : vector<1x16x256xf32> to vector<16x256xf32>
    %20 = vector.shape_cast %17 : vector<16x256xf32> to vector<1x16x256xf32>
    tpu.vector_store %arg7[%c0_13, %c0_14, %c0_15], %20 {strides = array<i32>} : memref<1x16x256xf32, #tpu.memory_space<vmem>>, vector<1x16x256xf32>,
    return
  }
  func.func @transform_0(%arg0: i32, %arg1: i32) -> (i32, i32, i32) {
    %c0_i32 = arith.constant 0 : i32
    %c0_i32_0 = arith.constant 0 : i32
    return %arg0, %c0_i32, %arg1 : i32, i32, i32
  }
  func.func @transform_1(%arg0: i32, %arg1: i32) -> (i32, i32) {
    %c0_i32 = arith.constant 0 : i32
    %c0_i32_0 = arith.constant 0 : i32
    %c0_i32_1 = arith.constant 0 : i32
    return %c0_i32, %c0_i32_0 : i32, i32
  }
  func.func @transform_2(%arg0: i32, %arg1: i32) -> (i32, i32) {
    %c0_i32 = arith.constant 0 : i32
    %c0_i32_0 = arith.constant 0 : i32
    %c0_i32_1 = arith.constant 0 : i32
    return %c0_i32, %c0_i32_0 : i32, i32
  }
  func.func @transform_3(%arg0: i32, %arg1: i32) -> (i32, i32) {
    %c0_i32 = arith.constant 0 : i32
    %c0_i32_0 = arith.constant 0 : i32
    %c0_i32_1 = arith.constant 0 : i32
    return %c0_i32, %c0_i32_0 : i32, i32
  }
  func.func @transform_4(%arg0: i32, %arg1: i32) -> (i32, i32) {
    %c0_i32 = arith.constant 0 : i32
    %c0_i32_0 = arith.constant 0 : i32
    %c0_i32_1 = arith.constant 0 : i32
    return %c0_i32, %c0_i32_0 : i32, i32
  }
  func.func @transform_5(%arg0: i32, %arg1: i32) -> (i32, i32, i32) {
    %c0_i32 = arith.constant 0 : i32
    %c0_i32_0 = arith.constant 0 : i32
    return %arg0, %c0_i32, %arg1 : i32, i32, i32
  }
}

</mosaic_0001>

<llo_original>
// kernel: tpu_custom_call.1
$region0: #{tpu_custom_call.1}
  #allocation0 [shape = 'u32[]', space=smem, size = 0x4, offset = 0x4, fixed_abs, tag = 'smem constant byte address 0x4 - core index']
  #allocation1 [shape = 'u32[144,128]{1,0:T(1,128)}', space=vmem, size = 0x12000, scoped, tag = 'internal scratch']
  %s0 = inlined_call_operand.hbm [shape: f32[2,4,256], index: 0, kind: input, shape index: {}]
  %s1 = inlined_call_operand.hbm [shape: bf16[16,4], index: 1, kind: input, shape index: {}]
  %s2 = inlined_call_operand.hbm [shape: f32[16,1], index: 2, kind: input, shape index: {}]
  %s3 = inlined_call_operand.hbm [shape: bf16[16,16], index: 3, kind: input, shape index: {}]
  %s4 = inlined_call_operand.hbm [shape: f32[16,1], index: 4, kind: input, shape index: {}]
  %s5 = inlined_call_operand.hbm [shape: f32[2,16,256], index: 5, kind: output, shape index: {}]
  %s6 = sld [smem:[#allocation0]]
  $region73: #{tpu_custom_call.1} parent=0
    _
  %s8 = ssub.s32 1, %s6
  %s9 = scalar_select 0, %s8, %s6
  $region1: #{tpu_custom_call.1} parent=0
    #allocation2 [shape = 'u8[8192]{0}', space=vmem, size = 0x2000, scoped, tag = 'input window, operand 0']
    #allocation3 [shape = 's32[2]{0}', space=sflag, size = 0x8, scoped, tag = 'scoped memory for tpu_custom_call.1']
    #allocation4 [shape = 's32[2]{0}', space=sflag, size = 0x8, scoped, tag = 'scoped memory for tpu_custom_call.1']
    #allocation5 [shape = 'u8[4096]{0}', space=vmem, size = 0x1000, scoped, tag = 'input window, operand 1, single buffered']
    #allocation6 [shape = 's32[1]{0}', space=sflag, size = 0x4, scoped, tag = 'scoped memory for tpu_custom_call.1']
    #allocation7 [shape = 'u8[8192]{0}', space=vmem, size = 0x2000, scoped, tag = 'input window, operand 2, single buffered']
    #allocation8 [shape = 'u8[4096]{0}', space=vmem, size = 0x1000, scoped, tag = 'input window, operand 3, single buffered']
    #allocation9 [shape = 's32[1]{0}', space=sflag, size = 0x4, scoped, tag = 'scoped memory for tpu_custom_call.1']
    #allocation10 [shape = 'u8[8192]{0}', space=vmem, size = 0x2000, scoped, tag = 'input window, operand 4, single buffered']
    #allocation11 [shape = 'u8[32768]{0}', space=vmem, size = 0x8000, scoped, tag = 'output window, operand 0']
    %10 = vsyncpa [#allocation3], 0
    %s11 = scalar_lea.sflag [#allocation3], 1
    %12 = vsyncpa %s11, 0
    %13 = vsyncpa [#allocation6], 0
    %14 = vsyncpa [#allocation9], 0
    %15 = vsyncpa [#allocation4], 0
    %s16 = scalar_lea.sflag [#allocation4], 1
    %17 = vsyncpa %s16, 0
    loop: start=0, step=1, limit=4
    $region2: #{tpu_custom_call.1} parent=1 // loop_pre_header
      _
    $region3: #{tpu_custom_call.1} parent=1 // loop_header
      %s19 = sphi 0, %s23
      %p20 = scmp.ge.s32.totalorder %s19, 4
      %s26 = sphi 0, %s38
      %s27 = sphi 0, %s34
      %s28 = sphi 0, %s26
      %s29 = sphi 0, %s27
      %s30 = sphi 0, %s28
      %s31 = sphi 0, %s29
      %s43 = sphi 0, %s45
      %s46 = sphi 0, %s43
      %s47 = sphi 0, %s46
      %s63 = sphi 0, %s47
      %s67 = sphi 0, %s67
      %s69 = sphi 0, %s67
      %s70 = sphi 0, %s69
      %s84 = sphi 0, %s70
      %s88 = sphi 0, %s88
      %s90 = sphi 0, %s88
      %s91 = sphi 0, %s90
      %s105 = sphi 0, %s91
      %s109 = sphi 0, %s109
      %s111 = sphi 0, %s109
      %s112 = sphi 0, %s111
      %s126 = sphi 0, %s112
      %s130 = sphi 0, %s130
      %s132 = sphi 0, %s130
      %s133 = sphi 0, %s132
      %s147 = sphi 0, %s133
      %s155 = sphi 0, %s157
      %s158 = sphi 0, %s155
      %s159 = sphi 0, %s158
      %s175 = sphi 0, %s159
    $region4: #{tpu_custom_call.1} parent=1 // loop_header_branch
      %22 = sbr.rel (%p20) target = $region8
    $region5: #{tpu_custom_call.1} parent=1 // loop_body
      %s24 = ssub.s32 %s19, 1
      %s25 = ssub.s32 %s19, 2
      %s32 = sadd.s32 1, %s27
      %p33 = scmp.ge.s32.totalorder %s32, 1
      %s34 = scalar_select %p33, 0, %s32
      %s35 = sadd.s32 1, %s26
      %s36 = scalar_select %p33, %s35, %s26
      %p37 = scmp.ge.s32.totalorder %s36, 2
      %s38 = scalar_select %p37, 0, %s36
      %s39 = ssub.s32 %s26, %s38
      %s40 = ssub.s32 %s27, %s34
      %s41 = sor.u32 %s39, %s40
      %p42 = scmp.eq.s32.totalorder %s41, 0
      %s44 = sadd.s32 %s43, 1
      %s45 = scalar_select %p42, %s43, %s44
      %p48 = pneg %p42
      %p49 = scmp.eq.s32.totalorder %s19, 1
      %p50 = por %p48, %p49
      %p51 = scmp.ne.s32.totalorder %s43, %s46
      %p52 = scmp.eq.s32.totalorder %s19, 0
      %p53 = por %p51, %p52
      %p54 = scmp.ne.s32.totalorder %s43, %s46
      %p55 = scmp.eq.s32.totalorder %s24, 1
      %p56 = por %p54, %p55
      %p57 = scmp.ne.s32.totalorder %s46, %s47
      %p58 = scmp.eq.s32.totalorder %s24, 0
      %p59 = por %p57, %p58
      %p60 = scmp.ne.s32.totalorder %s46, %s47
      %p61 = scmp.eq.s32.totalorder %s25, 1
      %p62 = por %p60, %p61
      %p64 = scmp.ne.s32.totalorder %s47, %s63
      %p65 = scmp.eq.s32.totalorder %s25, 0
      %p66 = por %p64, %p65
      %s68 = sadd.s32 %s67, 1
      %p71 = scmp.eq.s32.totalorder %s19, 1
      %p72 = scmp.ne.s32.totalorder %s67, %s69
      %p73 = scmp.eq.s32.totalorder %s19, 0
      %p74 = por %p72, %p73
      %p75 = scmp.ne.s32.totalorder %s67, %s69
      %p76 = scmp.eq.s32.totalorder %s24, 1
      %p77 = por %p75, %p76
      %p78 = scmp.ne.s32.totalorder %s69, %s70
      %p79 = scmp.eq.s32.totalorder %s24, 0
      %p80 = por %p78, %p79
      %p81 = scmp.ne.s32.totalorder %s69, %s70
      %p82 = scmp.eq.s32.totalorder %s25, 1
      %p83 = por %p81, %p82
      %p85 = scmp.ne.s32.totalorder %s70, %s84
      %p86 = scmp.eq.s32.totalorder %s25, 0
      %p87 = por %p85, %p86
      %s89 = sadd.s32 %s88, 1
      %p92 = scmp.eq.s32.totalorder %s19, 1
      %p93 = scmp.ne.s32.totalorder %s88, %s90
      %p94 = scmp.eq.s32.totalorder %s19, 0
      %p95 = por %p93, %p94
      %p96 = scmp.ne.s32.totalorder %s88, %s90
      %p97 = scmp.eq.s32.totalorder %s24, 1
      %p98 = por %p96, %p97
      %p99 = scmp.ne.s32.totalorder %s90, %s91
      %p100 = scmp.eq.s32.totalorder %s24, 0
      %p101 = por %p99, %p100
      %p102 = scmp.ne.s32.totalorder %s90, %s91
      %p103 = scmp.eq.s32.totalorder %s25, 1
      %p104 = por %p102, %p103
      %p106 = scmp.ne.s32.totalorder %s91, %s105
      %p107 = scmp.eq.s32.totalorder %s25, 0
      %p108 = por %p106, %p107
      %s110 = sadd.s32 %s109, 1
      %p113 = scmp.eq.s32.totalorder %s19, 1
      %p114 = scmp.ne.s32.totalorder %s109, %s111
      %p115 = scmp.eq.s32.totalorder %s19, 0
      %p116 = por %p114, %p115
      %p117 = scmp.ne.s32.totalorder %s109, %s111
      %p118 = scmp.eq.s32.totalorder %s24, 1
      %p119 = por %p117, %p118
      %p120 = scmp.ne.s32.totalorder %s111, %s112
      %p121 = scmp.eq.s32.totalorder %s24, 0
      %p122 = por %p120, %p121
      %p123 = scmp.ne.s32.totalorder %s111, %s112
      %p124 = scmp.eq.s32.totalorder %s25, 1
      %p125 = por %p123, %p124
      %p127 = scmp.ne.s32.totalorder %s112, %s126
      %p128 = scmp.eq.s32.totalorder %s25, 0
      %p129 = por %p127, %p128
      %s131 = sadd.s32 %s130, 1
      %p134 = scmp.eq.s32.totalorder %s19, 1
      %p135 = scmp.ne.s32.totalorder %s130, %s132
      %p136 = scmp.eq.s32.totalorder %s19, 0
      %p137 = por %p135, %p136
      %p138 = scmp.ne.s32.totalorder %s130, %s132
      %p139 = scmp.eq.s32.totalorder %s24, 1
      %p140 = por %p138, %p139
      %p141 = scmp.ne.s32.totalorder %s132, %s133
      %p142 = scmp.eq.s32.totalorder %s24, 0
      %p143 = por %p141, %p142
      %p144 = scmp.ne.s32.totalorder %s132, %s133
      %p145 = scmp.eq.s32.totalorder %s25, 1
      %p146 = por %p144, %p145
      %p148 = scmp.ne.s32.totalorder %s133, %s147
      %p149 = scmp.eq.s32.totalorder %s25, 0
      %p150 = por %p148, %p149
      %s151 = ssub.s32 %s26, %s38
      %s152 = ssub.s32 %s27, %s34
      %s153 = sor.u32 %s151, %s152
      %p154 = scmp.eq.s32.totalorder %s153, 0
      %s156 = sadd.s32 %s155, 1
      %s157 = scalar_select %p154, %s155, %s156
      %p160 = pneg %p154
      %p161 = scmp.eq.s32.totalorder %s19, 1
      %p162 = por %p160, %p161
      %p163 = scmp.ne.s32.totalorder %s155, %s158
      %p164 = scmp.eq.s32.totalorder %s19, 0
      %p165 = por %p163, %p164
      %p166 = scmp.ne.s32.totalorder %s155, %s158
      %p167 = scmp.eq.s32.totalorder %s24, 1
      %p168 = por %p166, %p167
      %p169 = scmp.ne.s32.totalorder %s158, %s159
      %p170 = scmp.eq.s32.totalorder %s24, 0
      %p171 = por %p169, %p170
      %p172 = scmp.ne.s32.totalorder %s158, %s159
      %p173 = scmp.eq.s32.totalorder %s25, 1
      %p174 = por %p172, %p173
      %p176 = scmp.ne.s32.totalorder %s159, %s175
      %p177 = scmp.eq.s32.totalorder %s25, 0
      %p178 = por %p176, %p177
      %p179 = scmp.le.s32.totalorder 1, %s19
      %p180 = scmp.lt.s32.totalorder %s19, 3
      %p181 = pnand %p179, %p180
      %p182 = pneg %p181
      // Predicated region
      $region9: #{tpu_custom_call.1} parent=5 // pred_check
        _
      $region10: #{tpu_custom_call.1} parent=5 // pred_check_branch
        %184 = sbr.rel (%p181) target = $region12
      $region11: #{tpu_custom_call.1} parent=5 // pred_region
        %s185 = ssub.s32 %s19, 1
        // Predicated region
        $region13: #{tpu_custom_call.1} parent=11 // pred_check
          %p186 = pneg %p80
        $region14: #{tpu_custom_call.1} parent=11 // pred_check_branch
          %188 = sbr.rel (%p186) target = $region16
        $region15: #{tpu_custom_call.1} parent=11 // pred_region
          %s190 = ssub.s32 128, 128
          %191 = vsyncadd [#allocation6], %s190
          %s192 = sshll.u32 [#allocation5], 4
          %s193 = int_to_ptr.vmem [resolvable:$true] %s192
          %198 = dma.hbm_to_vmem [thread:$0]  %s1, 128, %s193, [#allocation6], 64, 64, 4
        $region16: #{tpu_custom_call.1} parent=11 // pred_fallthru
          _
        // Predicated region
        $region17: #{tpu_custom_call.1} parent=11 // pred_check
          %p199 = pneg %p101
        $region18: #{tpu_custom_call.1} parent=11 // pred_check_branch
          %201 = sbr.rel (%p199) target = $region20
        $region19: #{tpu_custom_call.1} parent=11 // pred_region
          %s203 = ssub.s32 256, 256
          %204 = vsyncadd [#allocation6], %s203
          %s205 = sshll.u32 [#allocation7], 4
          %s206 = int_to_ptr.vmem [resolvable:$true] %s205
          %211 = dma.hbm_to_vmem [thread:$0]  %s2, 256, %s206, [#allocation6], 128, 128, 8
        $region20: #{tpu_custom_call.1} parent=11 // pred_fallthru
          _
        // Predicated region
        $region21: #{tpu_custom_call.1} parent=11 // pred_check
          %p212 = pneg %p122
        $region22: #{tpu_custom_call.1} parent=11 // pred_check_branch
          %214 = sbr.rel (%p212) target = $region24
        $region23: #{tpu_custom_call.1} parent=11 // pred_region
          %s216 = ssub.s32 128, 128
          %217 = vsyncadd [#allocation9], %s216
          %s218 = sshll.u32 [#allocation8], 4
          %s219 = int_to_ptr.vmem [resolvable:$true] %s218
          %224 = dma.hbm_to_vmem [thread:$0]  %s3, 128, %s219, [#allocation9], 64, 64, 4
        $region24: #{tpu_custom_call.1} parent=11 // pred_fallthru
          _
        // Predicated region
        $region25: #{tpu_custom_call.1} parent=11 // pred_check
          %p225 = pneg %p143
        $region26: #{tpu_custom_call.1} parent=11 // pred_check_branch
          %227 = sbr.rel (%p225) target = $region28
        $region27: #{tpu_custom_call.1} parent=11 // pred_region
          %s229 = ssub.s32 256, 256
          %230 = vsyncadd [#allocation9], %s229
          %s231 = sshll.u32 [#allocation10], 4
          %s232 = int_to_ptr.vmem [resolvable:$true] %s231
          %237 = dma.hbm_to_vmem [thread:$0]  %s4, 256, %s232, [#allocation9], 128, 128, 8
        $region28: #{tpu_custom_call.1} parent=11 // pred_fallthru
          _
      $region12: #{tpu_custom_call.1} parent=5 // pred_fallthru
        _
      %p238 = scmp.lt.s32.totalorder %s19, 2
      // Predicated region
      $region29: #{tpu_custom_call.1} parent=5 // pred_check
        %p239 = pneg %p238
      $region30: #{tpu_custom_call.1} parent=5 // pred_check_branch
        %241 = sbr.rel (%p239) target = $region32
      $region31: #{tpu_custom_call.1} parent=5 // pred_region
        // Predicated region
        $region33: #{tpu_custom_call.1} parent=31 // pred_check
          %p242 = pneg %p53
        $region34: #{tpu_custom_call.1} parent=31 // pred_check_branch
          %244 = sbr.rel (%p242) target = $region36
        $region35: #{tpu_custom_call.1} parent=31 // pred_region
          %s245 = sand.u32 %s43, 1
          %s246 = scalar_lea.sflag [#allocation3], %s245
          %s247 = sand.u32 %s43, 1
          %s248 = smul.addr %s247, 8
          %s249 = scalar_lea.vmem [#allocation2], %s248
          %s250 = smul.u32 2, %s27
          %s252 = ssub.s32 128, 128
          %253 = vsyncadd %s246, %s252
          %s254 = smul.addr %s26, 2
          %s255 = sadd.s32 %s250, %s254
          %s256 = smul.addr %s255, 64
          %s257 = scalar_lea.hbm %s0, %s256
          %s259 = sshll.u32 %s249, 4
          %s260 = int_to_ptr.vmem [resolvable:$true] %s259
          %262 = dma.hbm_to_vmem [thread:$0]  %s257, 128, %s260, %s246
        $region36: #{tpu_custom_call.1} parent=31 // pred_fallthru
          _
      $region32: #{tpu_custom_call.1} parent=5 // pred_fallthru
        _
      %p263 = scmp.le.s32.totalorder 1, %s19
      %p264 = scmp.lt.s32.totalorder %s19, 3
      %p265 = pnand %p263, %p264
      %p266 = pneg %p265
      // Predicated region
      $region37: #{tpu_custom_call.1} parent=5 // pred_check
        _
      $region38: #{tpu_custom_call.1} parent=5 // pred_check_branch
        %268 = sbr.rel (%p265) target = $region40
      $region39: #{tpu_custom_call.1} parent=5 // pred_region
        %s269 = ssub.s32 %s19, 1
        %s270 = sand.u32 %s46, 1
        %s271 = scalar_lea.sflag [#allocation3], %s270
        %s272 = sand.u32 %s46, 1
        %s273 = smul.addr %s272, 8
        %s274 = scalar_lea.vmem [#allocation2], %s273
        // Predicated region
        $region41: #{tpu_custom_call.1} parent=39 // pred_check
          %p275 = pneg %p59
        $region42: #{tpu_custom_call.1} parent=39 // pred_check_branch
          %277 = sbr.rel (%p275) target = $region44
        $region43: #{tpu_custom_call.1} parent=39 // pred_region
          %278 = dma.done %s271, 128
        $region44: #{tpu_custom_call.1} parent=39 // pred_fallthru
          _
        // Predicated region
        $region45: #{tpu_custom_call.1} parent=39 // pred_check
          %p279 = pneg %p80
        $region46: #{tpu_custom_call.1} parent=39 // pred_check_branch
          %281 = sbr.rel (%p279) target = $region48
        $region47: #{tpu_custom_call.1} parent=39 // pred_region
          %282 = dma.done [#allocation6], 128
        $region48: #{tpu_custom_call.1} parent=39 // pred_fallthru
          _
        // Predicated region
        $region49: #{tpu_custom_call.1} parent=39 // pred_check
          %p283 = pneg %p101
        $region50: #{tpu_custom_call.1} parent=39 // pred_check_branch
          %285 = sbr.rel (%p283) target = $region52
        $region51: #{tpu_custom_call.1} parent=39 // pred_region
          %286 = dma.done [#allocation6], 256
        $region52: #{tpu_custom_call.1} parent=39 // pred_fallthru
          _
        // Predicated region
        $region53: #{tpu_custom_call.1} parent=39 // pred_check
          %p287 = pneg %p122
        $region54: #{tpu_custom_call.1} parent=39 // pred_check_branch
          %289 = sbr.rel (%p287) target = $region56
        $region55: #{tpu_custom_call.1} parent=39 // pred_region
          %290 = dma.done [#allocation9], 128
        $region56: #{tpu_custom_call.1} parent=39 // pred_fallthru
          _
        // Predicated region
        $region57: #{tpu_custom_call.1} parent=39 // pred_check
          %p291 = pneg %p143
        $region58: #{tpu_custom_call.1} parent=39 // pred_check_branch
          %293 = sbr.rel (%p291) target = $region60
        $region59: #{tpu_custom_call.1} parent=39 // pred_region
          %294 = dma.done [#allocation9], 256
        $region60: #{tpu_custom_call.1} parent=39 // pred_fallthru
          _
        %s295 = sand.u32 %s46, 1
        %s296 = scalar_lea.sflag [#allocation3], %s295
        %s297 = sand.u32 %s46, 1
        %s298 = smul.addr %s297, 8
        %s299 = scalar_lea.vmem [#allocation2], %s298
        %p300 = pneg %p59
        %p301 = pneg %p56
        %p302 = pneg %p80
        %p303 = pneg %p77
        %p304 = pneg %p101
        %p305 = pneg %p98
        %p306 = pneg %p122
        %p307 = pneg %p119
        %p308 = pneg %p143
        %p309 = pneg %p140
        %p310 = pneg %p171
        %p311 = pneg %p168
        %s312 = sand.u32 %s158, 1
        %s313 = scalar_lea.sflag [#allocation4], %s312
        %s314 = sand.u32 %s158, 1
        %s315 = smul.addr %s314, 32
        %s316 = scalar_lea.vmem [#allocation11], %s315
        %s317 = smul.u32 2, %s29
        %s318 = smul.u32 2, %s29
        %v320 = vld [vmem:[%s274] sm:$0xff]
        %v322 = vcombine.high %v320, %v320
        %v324 = vpack.c.bf16 %v320, %v320
        %v325 = vpack.c.bf16 %v322, %v322
        %v326 = vld [vmem:[#allocation5] sm:$0xf]
        %v327 = vld [vmem:[#allocation5 + $0x4] sm:$0xf]
        %v328 = vld [vmem:[#allocation7] sm:$0xff]
        %v329 = vld [vmem:[#allocation7 + $0x8] sm:$0xff]
        %331 = vset.pattern.permute.xlu0 0
        %332 = vperm.xlu0 %331, %v328
        %v333 = vpop.permute.xlu0 %332
        %336 = vset.pattern.permute.xlu0 0
        %337 = vperm.xlu0 %336, %v329
        %v338 = vpop.permute.xlu0 %337
        %v342 = vunpack.c.l.b16 %v326
        %v343 = vunpack.c.l.b16 %v327
        %v344 = vpack.c.b16 %v343, %v342
        %vm345 = vcmask 31744
        %v347 = vsel %vm345, %v344, 0
        %vm349 = vcmask 1041408
        %v351 = vsel %vm349, %v324, 0
        %v354 = vsel %vm349, %v325, 0
        %356 = vmatprep.subr.bf16.mxu0 %v354
        %357 = vmatpush1.bf16.msra.mxu0 %v351
        %358 = vmatprep.subr.bf16.mxu0 0
        %359 = vmatpush1.bf16.msra.mxu0 0
        %360 = vmatprep.subr.bf16.mxu0 0
        %361 = vmatpush1.bf16.msra.mxu0 0
        %362 = vmatprep.subr.bf16.mxu0 0
        %363 = vmatpush1.bf16.msra.mxu0 0
        %364 = vmatprep.subr.bf16.mxu0 0
        %365 = vmatpush1.bf16.msra.mxu0 0
        %366 = vmatprep.subr.bf16.mxu0 0
        %367 = vmatpush1.bf16.msra.mxu0 0
        %368 = vmatprep.subr.bf16.mxu0 0
        %369 = vmatpush1.bf16.msra.mxu0 0
        %370 = vmatprep.subr.bf16.mxu0 0
        %371 = vmatpush1.bf16.msra.mxu0 0
        %372 = vmatprep.subr.bf16.mxu0 0
        %373 = vmatpush1.bf16.msra.mxu0 0
        %374 = vmatprep.subr.bf16.mxu0 0
        %375 = vmatpush1.bf16.msra.mxu0 0
        %376 = vmatprep.subr.bf16.mxu0 0
        %377 = vmatpush1.bf16.msra.mxu0 0
        %378 = vmatprep.subr.bf16.mxu0 0
        %379 = vmatpush1.bf16.msra.mxu0 0
        %380 = vmatprep.subr.bf16.mxu0 0
        %381 = vmatpush1.bf16.msra.mxu0 0
        %382 = vmatprep.subr.bf16.mxu0 0
        %383 = vmatpush1.bf16.msra.mxu0 0
        %384 = vmatprep.subr.bf16.mxu0 0
        %385 = vmatpush1.bf16.msra.mxu0 0
        %386 = vmatprep.subr.bf16.mxu0 0
        %387 = vmatpush1.bf16.msra.mxu0 0
        %388 = vmatprep.mubr.bf16.mxu0 0
        %389 = vmatmul.mubr.bf16.gmra.mrb[0].mxu0 %v347
        %v390 = vpop.f32.mrb[0].mxu0
        %v391 = vadd.f32 %v333, %v390
        %v392 = vpop.f32.mrb[0].mxu0
        %v393 = vadd.f32 %v333, %v392
        %v394 = vpop.f32.mrb[0].mxu0
        %v395 = vadd.f32 %v338, %v394
        %v396 = vpop.f32.mrb[0].mxu0
        %v397 = vadd.f32 %v338, %v396
        %398 = vdwg.mxu0
        %v399 = vmax.f32 %v391, 0.0
        %v400 = vmax.f32 %v393, 0.0
        %v401 = vmax.f32 %v395, 0.0
        %v402 = vmax.f32 %v397, 0.0
        %v403 = vld [vmem:[#allocation8] sm:$0xf]
        %v404 = vld [vmem:[#allocation8 + $0x4] sm:$0xf]
        %v405 = vpack.c.bf16 %v401, %v399
        %v406 = vpack.c.bf16 %v402, %v400
        %v407 = vld [vmem:[#allocation10] sm:$0xff]
        %v408 = vld [vmem:[#allocation10 + $0x8] sm:$0xff]
        %410 = vset.pattern.permute.xlu0 0
        %411 = vperm.xlu0 %410, %v407
        %v412 = vpop.permute.xlu0 %411
        %415 = vset.pattern.permute.xlu0 0
        %416 = vperm.xlu0 %415, %v408
        %v417 = vpop.permute.xlu0 %416
        %v421 = vunpack.c.l.b16 %v403
        %v422 = vunpack.c.l.b16 %v404
        %v423 = vpack.c.b16 %v422, %v421
        %vm424 = vcmask 130048
        %v426 = vsel %vm424, %v423, 0
        %428 = vmatprep.subr.bf16.mxu0 %v406
        %429 = vmatpush1.bf16.msra.mxu0 %v405
        %430 = vmatprep.subr.bf16.mxu0 0
        %431 = vmatpush1.bf16.msra.mxu0 0
        %432 = vmatprep.subr.bf16.mxu0 0
        %433 = vmatpush1.bf16.msra.mxu0 0
        %434 = vmatprep.subr.bf16.mxu0 0
        %435 = vmatpush1.bf16.msra.mxu0 0
        %436 = vmatprep.subr.bf16.mxu0 0
        %437 = vmatpush1.bf16.msra.mxu0 0
        %438 = vmatprep.subr.bf16.mxu0 0
        %439 = vmatpush1.bf16.msra.mxu0 0
        %440 = vmatprep.subr.bf16.mxu0 0
        %441 = vmatpush1.bf16.msra.mxu0 0
        %442 = vmatprep.subr.bf16.mxu0 0
        %443 = vmatpush1.bf16.msra.mxu0 0
        %444 = vmatprep.subr.bf16.mxu0 0
        %445 = vmatpush1.bf16.msra.mxu0 0
        %446 = vmatprep.subr.bf16.mxu0 0
        %447 = vmatpush1.bf16.msra.mxu0 0
        %448 = vmatprep.subr.bf16.mxu0 0
        %449 = vmatpush1.bf16.msra.mxu0 0
        %450 = vmatprep.subr.bf16.mxu0 0
        %451 = vmatpush1.bf16.msra.mxu0 0
        %452 = vmatprep.subr.bf16.mxu0 0
        %453 = vmatpush1.bf16.msra.mxu0 0
        %454 = vmatprep.subr.bf16.mxu0 0
        %455 = vmatpush1.bf16.msra.mxu0 0
        %456 = vmatprep.subr.bf16.mxu0 0
        %457 = vmatpush1.bf16.msra.mxu0 0
        %458 = vmatprep.subr.bf16.mxu0 0
        %459 = vmatpush1.bf16.msra.mxu0 0
        %460 = vmatprep.mubr.bf16.mxu0 0
        %461 = vmatmul.mubr.bf16.gmra.mrb[0].mxu0 %v426
        %v462 = vpop.f32.mrb[0].mxu0
        %v463 = vadd.f32 %v412, %v462
        %v464 = vpop.f32.mrb[0].mxu0
        %v465 = vadd.f32 %v412, %v464
        %v466 = vpop.f32.mrb[0].mxu0
        %v467 = vadd.f32 %v417, %v466
        %v468 = vpop.f32.mrb[0].mxu0
        %v469 = vadd.f32 %v417, %v468
        %470 = vdwg.mxu0
        %v471 = vmax.f32 %v463, 0.0
        %v472 = vmax.f32 %v465, 0.0
        %v473 = vmax.f32 %v467, 0.0
        %v474 = vmax.f32 %v469, 0.0
        %475 = vst [vmem:[%s316] sm:$0xff] %v471
        %476 = vst [vmem:[%s316 + $0x8] sm:$0xff] %v472
        %477 = vst [vmem:[%s316 + $0x10] sm:$0xff] %v473
        %478 = vst [vmem:[%s316 + $0x18] sm:$0xff] %v474
        %s479 = sand.u32 %s158, 1
        %s480 = scalar_lea.sflag [#allocation4], %s479
        %s481 = sand.u32 %s158, 1
        %s482 = smul.addr %s481, 32
        %s483 = scalar_lea.vmem [#allocation11], %s482
        // Predicated region
        $region61: #{tpu_custom_call.1} parent=39 // pred_check
          %p484 = pneg %p168
        $region62: #{tpu_custom_call.1} parent=39 // pred_check_branch
          %486 = sbr.rel (%p484) target = $region64
        $region63: #{tpu_custom_call.1} parent=39 // pred_region
          %s487 = smul.u32 2, %s29
          %s489 = ssub.s32 512, 512
          %490 = vsyncadd %s480, %s489
          %s491 = smul.addr %s28, 4
          %s492 = sadd.s32 %s487, %s491
          %s493 = smul.addr %s492, 128
          %s494 = scalar_lea.hbm %s5, %s493
          %s495 = sshll.u32 %s483, 4
          %s496 = int_to_ptr.vmem [resolvable:$true] %s495
          %501 = dma.vmem_to_hbm [thread:$0]  %s496, 512, %s494, %s480, 256, 256, 16
        $region64: #{tpu_custom_call.1} parent=39 // pred_fallthru
          _
      $region40: #{tpu_custom_call.1} parent=5 // pred_fallthru
        _
      %p502 = scmp.le.s32.totalorder 2, %s19
      // Predicated region
      $region65: #{tpu_custom_call.1} parent=5 // pred_check
        %p503 = pneg %p502
      $region66: #{tpu_custom_call.1} parent=5 // pred_check_branch
        %505 = sbr.rel (%p503) target = $region68
      $region67: #{tpu_custom_call.1} parent=5 // pred_region
        %s506 = ssub.s32 %s19, 2
        // Predicated region
        $region69: #{tpu_custom_call.1} parent=67 // pred_check
          %p507 = pneg %p174
        $region70: #{tpu_custom_call.1} parent=67 // pred_check_branch
          %509 = sbr.rel (%p507) target = $region72
        $region71: #{tpu_custom_call.1} parent=67 // pred_region
          %s510 = sand.u32 %s159, 1
          %s511 = scalar_lea.sflag [#allocation4], %s510
          %s512 = sand.u32 %s159, 1
          %s513 = smul.addr %s512, 32
          %s514 = scalar_lea.vmem [#allocation11], %s513
          %515 = dma.done %s511, 512
        $region72: #{tpu_custom_call.1} parent=67 // pred_fallthru
          _
      $region68: #{tpu_custom_call.1} parent=5 // pred_fallthru
        _
    $region6: #{tpu_custom_call.1} parent=1 // loop_footer
      %s23 = sadd.s32 1, %s19
    $region7: #{tpu_custom_call.1} parent=1 // loop_footer_branch
      %18 = sbr.rel target = $region3
    $region8: #{tpu_custom_call.1} parent=1 // loop_exit
      _
    %516 = vsyncpa [#allocation3], 1
    %s517 = scalar_lea.sflag [#allocation3], 1
    %518 = vsyncpa %s517, 1
    %519 = vsyncpa [#allocation6], 1
    %520 = vsyncpa [#allocation9], 1
    %521 = vsyncpa [#allocation4], 1
    %s522 = scalar_lea.sflag [#allocation4], 1
    %523 = vsyncpa %s522, 1

</llo_original>
